<compile_context>
chip_gen: v7x
topology: tpu7x:2x2x1
jax: 0.10.0
libtpu: 0.0.40
codegen_flags: <defaults>
</compile_context>

<pallas_src>
import functools

import jax
import jax.numpy as jnp
from jax import lax
from jax.experimental import pallas as pl
from jax.experimental.pallas import tpu as pltpu

_BN_EPS = 1e-5  # PyTorch BatchNorm2d default


# ----------------------------------------------------------------------------
# Pallas kernels
# ----------------------------------------------------------------------------
def _conv_gemm_kernel(p_ref, w_ref, y_ref, ssum_ref, ssq_ref):
    """One M-tile of conv-as-GEMM plus per-tile BatchNorm partial sums.

    p_ref:    (K, tm)    im2col patches, K = taps*Cin, lane axis = M tile
    w_ref:    (C, K)     packed conv weights (VMEM-resident across the grid)
    y_ref:    (C, tm)    raw conv output tile (lane-dense: M on lanes)
    ssum_ref: (1, C, 1)  per-tile per-channel sum       (for batch mean)
    ssq_ref:  (1, C, 1)  per-tile per-channel sum of sq (for batch var)
    """
    y = jnp.dot(w_ref[...], p_ref[...], preferred_element_type=jnp.float32)
    y_ref[...] = y
    ssum_ref[0] = jnp.sum(y, axis=1, keepdims=True)
    ssq_ref[0] = jnp.sum(y * y, axis=1, keepdims=True)


def _bn_add_relu_kernel(y2_ref, sc_ref, a2_ref, a3_ref, c_ref, o_ref):
    """out = relu( y2*a2 + sc*a3 + c ), per-channel a2/a3/c broadcast on lanes."""
    o_ref[...] = jnp.maximum(
        y2_ref[...] * a2_ref[...] + sc_ref[...] * a3_ref[...] + c_ref[...], 0.0)


# ----------------------------------------------------------------------------
# Pallas call wrappers
# ----------------------------------------------------------------------------
def _pick_tile(m, bytes_per_col, fixed_bytes=0, budget=24 << 20):
    """Largest M tile (multiple of 128) dividing M that fits the VMEM budget.

    bytes_per_col counts double-buffered per-M-column VMEM bytes of all
    streaming operands; fixed_bytes counts grid-resident operands (weights).
    Fits comfortably inside the default scoped-VMEM limit on v5e/v6e/v7x.
    """
    for t in (4096, 2048, 1024, 512, 256, 128):
        if m % t == 0 and fixed_bytes + t * bytes_per_col <= budget:
            return t
    return m  # tiny / ragged inputs: a single full-M block is always legal


def _conv_gemm(patches, w2d):
    """y[C, M] = w2d[C, K] @ patches[K, M], tiled over M, + BN partial sums."""
    k, m = patches.shape
    c = w2d.shape[0]
    itemsize = patches.dtype.itemsize
    # double-buffered patch tile + f32 output tile per M column; weights fixed.
    tm = _pick_tile(m, 2 * (k * itemsize + c * 4), fixed_bytes=2 * c * k * itemsize)
    t = m // tm
    cost = pl.CostEstimate(
        flops=2 * m * k * c,
        transcendentals=0,
        bytes_accessed=(k * m + c * k) * itemsize + (c * m + 2 * t * c) * 4,
    )
    y, ssum, ssq = pl.pallas_call(
        _conv_gemm_kernel,
        out_shape=(
            jax.ShapeDtypeStruct((c, m), jnp.float32),
            jax.ShapeDtypeStruct((t, c, 1), jnp.float32),
            jax.ShapeDtypeStruct((t, c, 1), jnp.float32),
        ),
        grid=(t,),
        in_specs=[
            pl.BlockSpec((k, tm), lambda i: (0, i)),   # patches tile (streams)
            pl.BlockSpec((c, k), lambda i: (0, 0)),    # weights (VMEM-resident)
        ],
        out_specs=(
            pl.BlockSpec((c, tm), lambda i: (0, i)),   # lane-dense conv output
            pl.BlockSpec((1, c, 1), lambda i: (i, 0, 0)),
            pl.BlockSpec((1, c, 1), lambda i: (i, 0, 0)),
        ),
        compiler_params=pltpu.CompilerParams(
            dimension_semantics=("parallel",)),        # shards across v7x TCs
        cost_estimate=cost,
    )(patches, w2d)
    return y, ssum, ssq


def _bn_add_relu(y2, ysc, a2, a3, shift):
    """Fused BN2-apply + BN3-apply(shortcut) + residual add + final ReLU."""
    ch, m = y2.shape
    tm = _pick_tile(m, 2 * 3 * ch * 4)
    t = m // tm
    tile = pl.BlockSpec((ch, tm), lambda i: (0, i))
    vec = pl.BlockSpec((ch, 1), lambda i: (0, 0))
    cost = pl.CostEstimate(
        flops=5 * ch * m, transcendentals=0,
        bytes_accessed=3 * ch * m * 4 + 3 * ch * 4)
    return pl.pallas_call(
        _bn_add_relu_kernel,
        out_shape=jax.ShapeDtypeStruct((ch, m), jnp.float32),
        grid=(t,),
        in_specs=[tile, tile, vec, vec, vec],
        out_specs=tile,
        compiler_params=pltpu.CompilerParams(
            dimension_semantics=("parallel",)),
        cost_estimate=cost,
    )(y2, ysc, a2, a3, shift)


# ----------------------------------------------------------------------------
# XLA-side glue (layout plumbing only; the hot FLOPs are in the Pallas calls)
# ----------------------------------------------------------------------------
def _im2col_t(x_cnhw, kh, kw, stride, pad):
    """(C, N, H, W) -> patches (kh*kw*C, N*Ho*Wo); K index = (dh*kw+dw)*C + c."""
    c, n, h, w = x_cnhw.shape
    ho = (h + 2 * pad - kh) // stride + 1
    wo = (w + 2 * pad - kw) // stride + 1
    xp = jnp.pad(x_cnhw, ((0, 0), (0, 0), (pad, pad), (pad, pad)))
    taps = []
    for dh in range(kh):
        for dw in range(kw):
            sl = xp[:, :,
                    dh:dh + (ho - 1) * stride + 1:stride,
                    dw:dw + (wo - 1) * stride + 1:stride]
            taps.append(sl.reshape(c, n * ho * wo))
    return jnp.concatenate(taps, axis=0), (ho, wo)


def _pack_weight(w_oihw):
    """(O, I, kh, kw) PyTorch layout -> (O, kh*kw*I), matching _im2col_t order."""
    o, i, kh, kw = w_oihw.shape
    return jnp.transpose(w_oihw, (0, 2, 3, 1)).reshape(o, kh * kw * i)


def _bn_scale_shift(ssum, ssq, m, gamma, beta):
    """Combine per-tile partials into BN(train) scale/shift: y*scale + shift."""
    mean = jnp.sum(ssum, axis=0)[:, 0] / m
    ex2 = jnp.sum(ssq, axis=0)[:, 0] / m
    var = ex2 - mean * mean          # biased batch variance (PyTorch training BN)
    scale = gamma.astype(jnp.float32) * lax.rsqrt(var + _BN_EPS)
    shift = beta.astype(jnp.float32) - mean * scale
    return scale.reshape(-1, 1), shift.reshape(-1, 1)


@functools.partial(jax.jit, static_argnames=("stride", "matmul_dtype"))
def residual_block(x_nchw, w1, g1, b1, w2, g2, b2,
                   w_sc=None, g_sc=None, b_sc=None, *,
                   stride, matmul_dtype=jnp.float32):
    """ResidualBlock forward (BatchNorm in training mode, batch statistics).

    matmul_dtype=jnp.bfloat16 on v6e/v7x gives ~2x MXU throughput and halves
    HBM/VMEM bytes for the GEMM operands (accumulation stays f32); the default
    f32 preserves PyTorch-f32 numerics.
    """
    n, cin, h, w = x_nchw.shape
    cout = w1.shape[0]
    has_proj = (stride != 1) or (cin != cout)

    x = jnp.transpose(x_nchw, (1, 0, 2, 3)).astype(jnp.float32)  # (Cin, N, H, W)

    # ---- conv1 (3x3, stride s, pad 1) : one GEMM with K = 9*Cin + BN1 partials
    p1, (ho, wo) = _im2col_t(x, 3, 3, stride, 1)
    m1 = n * ho * wo
    y1, s1, q1 = _conv_gemm(p1.astype(matmul_dtype),
                            _pack_weight(w1).astype(matmul_dtype))
    a1s, a1c = _bn_scale_shift(s1, q1, m1, g1, b1)

    # ---- BN1 apply + ReLU (elementwise; XLA fuses it into the conv2 im2col) --
    act1 = jnp.maximum(y1 * a1s + a1c, 0.0).reshape(cout, n, ho, wo)

    # ---- conv2 (3x3, stride 1, pad 1) : one GEMM with K = 9*Cout + BN2 partials
    p2, _ = _im2col_t(act1, 3, 3, 1, 1)
    y2, s2, q2 = _conv_gemm(p2.astype(matmul_dtype),
                            _pack_weight(w2).astype(matmul_dtype))
    a2s, a2c = _bn_scale_shift(s2, q2, m1, g2, b2)

    # ---- shortcut -----------------------------------------------------------
    if has_proj:
        # 1x1 conv stride s: patches are just the strided input, K = Cin.
        psc = x[:, :, ::stride, ::stride].reshape(cin, m1)
        ysc, ss, qs = _conv_gemm(psc.astype(matmul_dtype),
                                 w_sc.reshape(cout, cin).astype(matmul_dtype))
        a3s, a3c = _bn_scale_shift(ss, qs, m1, g_sc, b_sc)
    else:
        ysc = x.reshape(cout, m1)                       # identity shortcut
        a3s = jnp.ones((cout, 1), jnp.float32)
        a3c = jnp.zeros((cout, 1), jnp.float32)

    # ---- fused BN2 + BN3(shortcut) + residual add + final ReLU (Pallas) -----
    out = _bn_add_relu(y2, ysc, a2s, a3s, a2c + a3c)    # (Cout, M1)
    return jnp.transpose(out.reshape(cout, n, ho, wo), (1, 0, 2, 3))


# ----------------------------------------------------------------------------
# Pure-JAX reference (matches PyTorch ResidualBlock forward in training mode)
# ----------------------------------------------------------------------------
def _reference(x_nchw, w1, g1, b1, w2, g2, b2, w_sc, g_sc, b_sc, stride):
    def conv(x, wgt, s, pad):
        return lax.conv_general_dilated(
            x, wgt, window_strides=(s, s), padding=((pad, pad), (pad, pad)),
            dimension_numbers=("NCHW", "OIHW", "NCHW"),
            precision=lax.Precision.HIGHEST)

    def bn(y, g, b):
        mean = jnp.mean(y, axis=(0, 2, 3), keepdims=True)
        var = jnp.mean(jnp.square(y - mean), axis=(0, 2, 3), keepdims=True)
        return ((y - mean) * lax.rsqrt(var + _BN_EPS)
                * g.reshape(1, -1, 1, 1) + b.reshape(1, -1, 1, 1))

    x = x_nchw.astype(jnp.float32)
    left = jnp.maximum(bn(conv(x, w1, stride, 1), g1, b1), 0.0)
    left = bn(conv(left, w2, 1, 1), g2, b2)
    if w_sc is not None:
        sc = bn(conv(x, w_sc, stride, 0), g_sc, b_sc)
    else:
        sc = x
    return jnp.maximum(left + sc, 0.0)


# ----------------------------------------------------------------------------
if __name__ == "__main__":
    root = jax.random.PRNGKey(0)

    def make_params(key, cin, cout, need_proj):
        ks = jax.random.split(key, 8)
        w1 = 0.1 * jax.random.normal(ks[0], (cout, cin, 3, 3), jnp.float32)
        w2 = 0.1 * jax.random.normal(ks[1], (cout, cout, 3, 3), jnp.float32)
        g1 = 1.0 + 0.1 * jax.random.normal(ks[2], (cout,), jnp.float32)
        b1 = 0.1 * jax.random.normal(ks[3], (cout,), jnp.float32)
        g2 = 1.0 + 0.1 * jax.random.normal(ks[4], (cout,), jnp.float32)
        b2 = 0.1 * jax.random.normal(ks[5], (cout,), jnp.float32)
        if need_proj:
            w_sc = 0.1 * jax.random.normal(ks[6], (cout, cin, 1, 1), jnp.float32)
            g_sc = 1.0 + 0.1 * jax.random.normal(ks[7], (cout,), jnp.float32)
            b_sc = 0.05 * jnp.ones((cout,), jnp.float32)
        else:
            w_sc = g_sc = b_sc = None
        return w1, g1, b1, w2, g2, b2, w_sc, g_sc, b_sc

    # (cin, cout, stride): projection-shortcut (stride 2 and stride 1) + identity.
    configs = [(4, 8, 2), (4, 8, 1), (8, 8, 1)]

    for idx, (cin, cout, s) in enumerate(configs):
        kx, kp = jax.random.split(jax.random.fold_in(root, idx))
        x = jax.random.normal(kx, (2, cin, 16, 16), jnp.float32)
        params = make_params(kp, cin, cout, need_proj=(s != 1 or cin != cout))

        out = jax.block_until_ready(residual_block(x, *params, stride=s))
        ref = jax.block_until_ready(_reference(x, *params, s))

        assert out.shape == ref.shape, (out.shape, ref.shape)
        err = float(jnp.max(jnp.abs(out - ref)))
        assert err < 1e-3, f"config {(cin, cout, s)}: max abs err {err}"

    print("KERNEL_OK")
</pallas_src>

<mosaic_0001>
module attributes {stable_mosaic.version = 11 : i64} {
  func.func @_conv_gemm_kernel(%arg0: i32, %arg1: memref<36x128xf32, #tpu.memory_space<vmem>>, %arg2: memref<8x36xf32, #tpu.memory_space<vmem>>, %arg3: memref<8x128xf32, #tpu.memory_space<vmem>>, %arg4: memref<1x8x1xf32, #tpu.memory_space<vmem>>, %arg5: memref<1x8x1xf32, #tpu.memory_space<vmem>>) attributes {dimension_semantics = [#tpu.dimension_semantics<parallel>], iteration_bounds = array<i64: 1>, scalar_prefetch = 0 : i64, scratch_operands = 0 : i64, tpu.core_type = #tpu.core_type<tc>, window_params = [{transform_indices = @transform_0, window_bounds = array<i64: 36, 128>}, {pipeline_mode = #tpu.pipeline_mode<synchronous>, transform_indices = @transform_1, window_bounds = array<i64: 8, 36>}, {transform_indices = @transform_2, window_bounds = array<i64: 8, 128>}, {transform_indices = @transform_3, window_bounds = array<i64: 1, 8, 1>}, {transform_indices = @transform_4, window_bounds = array<i64: 1, 8, 1>}]} {
    %c0 = arith.constant 0 : index
    %c0_0 = arith.constant 0 : index
    %0 = vector.load %arg2[%c0, %c0_0] : memref<8x36xf32, #tpu.memory_space<vmem>>, vector<8x36xf32>
    %c0_1 = arith.constant 0 : index
    %c0_2 = arith.constant 0 : index
    %1 = vector.load %arg1[%c0_1, %c0_2] : memref<36x128xf32, #tpu.memory_space<vmem>>, vector<36x128xf32>
    %cst = arith.constant dense<0.000000e+00> : vector<8x128xf32>
    %2 = tpu.matmul %0, %1, %cst {dimension_numbers = #tpu.dot_dimension_numbers<[1], [0], [0], [1], [0, 0, 1, 1], [], []>} : vector<8x36xf32>, vector<36x128xf32>, vector<8x128xf32> -> vector<8x128xf32>
    %c0_3 = arith.constant 0 : index
    %c0_4 = arith.constant 0 : index
    %3 = vector.load %arg3[%c0_3, %c0_4] : memref<8x128xf32, #tpu.memory_space<vmem>>, vector<8x128xf32>
    tpu.vector_store %arg3[%c0_3, %c0_4], %2 {strides = array<i32>} : memref<8x128xf32, #tpu.memory_space<vmem>>, vector<8x128xf32>,
    %cst_5 = arith.constant dense<0.000000e+00> : vector<8xf32>
    %4 = vector.multi_reduction <add>, %2, %cst_5 [1] : vector<8x128xf32> to vector<8xf32>
    %5 = vector.shape_cast %4 : vector<8xf32> to vector<8x1xf32>
    %c0_6 = arith.constant 0 : index
    %c0_7 = arith.constant 0 : index
    %c0_8 = arith.constant 0 : index
    %6 = vector.load %arg4[%c0_6, %c0_7, %c0_8] : memref<1x8x1xf32, #tpu.memory_space<vmem>>, vector<1x8x1xf32>
    %7 = vector.shape_cast %6 : vector<1x8x1xf32> to vector<8x1xf32>
    %8 = vector.shape_cast %5 : vector<8x1xf32> to vector<1x8x1xf32>
    tpu.vector_store %arg4[%c0_6, %c0_7, %c0_8], %8 {strides = array<i32>} : memref<1x8x1xf32, #tpu.memory_space<vmem>>, vector<1x8x1xf32>,
    %9 = arith.mulf %2, %2 : vector<8x128xf32>
    %cst_9 = arith.constant dense<0.000000e+00> : vector<8xf32>
    %10 = vector.multi_reduction <add>, %9, %cst_9 [1] : vector<8x128xf32> to vector<8xf32>
    %11 = vector.shape_cast %10 : vector<8xf32> to vector<8x1xf32>
    %c0_10 = arith.constant 0 : index
    %c0_11 = arith.constant 0 : index
    %c0_12 = arith.constant 0 : index
    %12 = vector.load %arg5[%c0_10, %c0_11, %c0_12] : memref<1x8x1xf32, #tpu.memory_space<vmem>>, vector<1x8x1xf32>
    %13 = vector.shape_cast %12 : vector<1x8x1xf32> to vector<8x1xf32>
    %14 = vector.shape_cast %11 : vector<8x1xf32> to vector<1x8x1xf32>
    tpu.vector_store %arg5[%c0_10, %c0_11, %c0_12], %14 {strides = array<i32>} : memref<1x8x1xf32, #tpu.memory_space<vmem>>, vector<1x8x1xf32>,
    return
  }
  func.func @transform_0(%arg0: i32) -> (i32, i32) {
    %c0_i32 = arith.constant 0 : i32
    %c0_i32_0 = arith.constant 0 : i32
    return %c0_i32, %arg0 : i32, i32
  }
  func.func @transform_1(%arg0: i32) -> (i32, i32) {
    %c0_i32 = arith.constant 0 : i32
    %c0_i32_0 = arith.constant 0 : i32
    %c0_i32_1 = arith.constant 0 : i32
    return %c0_i32, %c0_i32_0 : i32, i32
  }
  func.func @transform_2(%arg0: i32) -> (i32, i32) {
    %c0_i32 = arith.constant 0 : i32
    %c0_i32_0 = arith.constant 0 : i32
    return %c0_i32, %arg0 : i32, i32
  }
  func.func @transform_3(%arg0: i32) -> (i32, i32, i32) {
    %c0_i32 = arith.constant 0 : i32
    %c0_i32_0 = arith.constant 0 : i32
    %c0_i32_1 = arith.constant 0 : i32
    return %arg0, %c0_i32, %c0_i32_0 : i32, i32, i32
  }
  func.func @transform_4(%arg0: i32) -> (i32, i32, i32) {
    %c0_i32 = arith.constant 0 : i32
    %c0_i32_0 = arith.constant 0 : i32
    %c0_i32_1 = arith.constant 0 : i32
    return %arg0, %c0_i32, %c0_i32_0 : i32, i32, i32
  }
}

module attributes {stable_mosaic.version = 11 : i64} {
  func.func @_conv_gemm_kernel(%arg0: i32, %arg1: memref<72x128xf32, #tpu.memory_space<vmem>>, %arg2: memref<8x72xf32, #tpu.memory_space<vmem>>, %arg3: memref<8x128xf32, #tpu.memory_space<vmem>>, %arg4: memref<1x8x1xf32, #tpu.memory_space<vmem>>, %arg5: memref<1x8x1xf32, #tpu.memory_space<vmem>>) attributes {dimension_semantics = [#tpu.dimension_semantics<parallel>], iteration_bounds = array<i64: 1>, scalar_prefetch = 0 : i64, scratch_operands = 0 : i64, tpu.core_type = #tpu.core_type<tc>, window_params = [{transform_indices = @transform_0, window_bounds = array<i64: 72, 128>}, {pipeline_mode = #tpu.pipeline_mode<synchronous>, transform_indices = @transform_1, window_bounds = array<i64: 8, 72>}, {transform_indices = @transform_2, window_bounds = array<i64: 8, 128>}, {transform_indices = @transform_3, window_bounds = array<i64: 1, 8, 1>}, {transform_indices = @transform_4, window_bounds = array<i64: 1, 8, 1>}]} {
    %c0 = arith.constant 0 : index
    %c0_0 = arith.constant 0 : index
    %0 = vector.load %arg2[%c0, %c0_0] : memref<8x72xf32, #tpu.memory_space<vmem>>, vector<8x72xf32>
    %c0_1 = arith.constant 0 : index
    %c0_2 = arith.constant 0 : index
    %1 = vector.load %arg1[%c0_1, %c0_2] : memref<72x128xf32, #tpu.memory_space<vmem>>, vector<72x128xf32>
    %cst = arith.constant dense<0.000000e+00> : vector<8x128xf32>
    %2 = tpu.matmul %0, %1, %cst {dimension_numbers = #tpu.dot_dimension_numbers<[1], [0], [0], [1], [0, 0, 1, 1], [], []>} : vector<8x72xf32>, vector<72x128xf32>, vector<8x128xf32> -> vector<8x128xf32>
    %c0_3 = arith.constant 0 : index
    %c0_4 = arith.constant 0 : index
    %3 = vector.load %arg3[%c0_3, %c0_4] : memref<8x128xf32, #tpu.memory_space<vmem>>, vector<8x128xf32>
    tpu.vector_store %arg3[%c0_3, %c0_4], %2 {strides = array<i32>} : memref<8x128xf32, #tpu.memory_space<vmem>>, vector<8x128xf32>,
    %cst_5 = arith.constant dense<0.000000e+00> : vector<8xf32>
    %4 = vector.multi_reduction <add>, %2, %cst_5 [1] : vector<8x128xf32> to vector<8xf32>
    %5 = vector.shape_cast %4 : vector<8xf32> to vector<8x1xf32>
    %c0_6 = arith.constant 0 : index
    %c0_7 = arith.constant 0 : index
    %c0_8 = arith.constant 0 : index
    %6 = vector.load %arg4[%c0_6, %c0_7, %c0_8] : memref<1x8x1xf32, #tpu.memory_space<vmem>>, vector<1x8x1xf32>
    %7 = vector.shape_cast %6 : vector<1x8x1xf32> to vector<8x1xf32>
    %8 = vector.shape_cast %5 : vector<8x1xf32> to vector<1x8x1xf32>
    tpu.vector_store %arg4[%c0_6, %c0_7, %c0_8], %8 {strides = array<i32>} : memref<1x8x1xf32, #tpu.memory_space<vmem>>, vector<1x8x1xf32>,
    %9 = arith.mulf %2, %2 : vector<8x128xf32>
    %cst_9 = arith.constant dense<0.000000e+00> : vector<8xf32>
    %10 = vector.multi_reduction <add>, %9, %cst_9 [1] : vector<8x128xf32> to vector<8xf32>
    %11 = vector.shape_cast %10 : vector<8xf32> to vector<8x1xf32>
    %c0_10 = arith.constant 0 : index
    %c0_11 = arith.constant 0 : index
    %c0_12 = arith.constant 0 : index
    %12 = vector.load %arg5[%c0_10, %c0_11, %c0_12] : memref<1x8x1xf32, #tpu.memory_space<vmem>>, vector<1x8x1xf32>
    %13 = vector.shape_cast %12 : vector<1x8x1xf32> to vector<8x1xf32>
    %14 = vector.shape_cast %11 : vector<8x1xf32> to vector<1x8x1xf32>
    tpu.vector_store %arg5[%c0_10, %c0_11, %c0_12], %14 {strides = array<i32>} : memref<1x8x1xf32, #tpu.memory_space<vmem>>, vector<1x8x1xf32>,
    return
  }
  func.func @transform_0(%arg0: i32) -> (i32, i32) {
    %c0_i32 = arith.constant 0 : i32
    %c0_i32_0 = arith.constant 0 : i32
    return %c0_i32, %arg0 : i32, i32
  }
  func.func @transform_1(%arg0: i32) -> (i32, i32) {
    %c0_i32 = arith.constant 0 : i32
    %c0_i32_0 = arith.constant 0 : i32
    %c0_i32_1 = arith.constant 0 : i32
    return %c0_i32, %c0_i32_0 : i32, i32
  }
  func.func @transform_2(%arg0: i32) -> (i32, i32) {
    %c0_i32 = arith.constant 0 : i32
    %c0_i32_0 = arith.constant 0 : i32
    return %c0_i32, %arg0 : i32, i32
  }
  func.func @transform_3(%arg0: i32) -> (i32, i32, i32) {
    %c0_i32 = arith.constant 0 : i32
    %c0_i32_0 = arith.constant 0 : i32
    %c0_i32_1 = arith.constant 0 : i32
    return %arg0, %c0_i32, %c0_i32_0 : i32, i32, i32
  }
  func.func @transform_4(%arg0: i32) -> (i32, i32, i32) {
    %c0_i32 = arith.constant 0 : i32
    %c0_i32_0 = arith.constant 0 : i32
    %c0_i32_1 = arith.constant 0 : i32
    return %arg0, %c0_i32, %c0_i32_0 : i32, i32, i32
  }
}

module attributes {stable_mosaic.version = 11 : i64} {
  func.func @_conv_gemm_kernel(%arg0: i32, %arg1: memref<4x128xf32, #tpu.memory_space<vmem>>, %arg2: memref<8x4xf32, #tpu.memory_space<vmem>>, %arg3: memref<8x128xf32, #tpu.memory_space<vmem>>, %arg4: memref<1x8x1xf32, #tpu.memory_space<vmem>>, %arg5: memref<1x8x1xf32, #tpu.memory_space<vmem>>) attributes {dimension_semantics = [#tpu.dimension_semantics<parallel>], iteration_bounds = array<i64: 1>, scalar_prefetch = 0 : i64, scratch_operands = 0 : i64, tpu.core_type = #tpu.core_type<tc>, window_params = [{transform_indices = @transform_0, window_bounds = array<i64: 4, 128>}, {pipeline_mode = #tpu.pipeline_mode<synchronous>, transform_indices = @transform_1, window_bounds = array<i64: 8, 4>}, {transform_indices = @transform_2, window_bounds = array<i64: 8, 128>}, {transform_indices = @transform_3, window_bounds = array<i64: 1, 8, 1>}, {transform_indices = @transform_4, window_bounds = array<i64: 1, 8, 1>}]} {
    %c0 = arith.constant 0 : index
    %c0_0 = arith.constant 0 : index
    %0 = vector.load %arg2[%c0, %c0_0] : memref<8x4xf32, #tpu.memory_space<vmem>>, vector<8x4xf32>
    %c0_1 = arith.constant 0 : index
    %c0_2 = arith.constant 0 : index
    %1 = vector.load %arg1[%c0_1, %c0_2] : memref<4x128xf32, #tpu.memory_space<vmem>>, vector<4x128xf32>
    %cst = arith.constant dense<0.000000e+00> : vector<8x128xf32>
    %2 = tpu.matmul %0, %1, %cst {dimension_numbers = #tpu.dot_dimension_numbers<[1], [0], [0], [1], [0, 0, 1, 1], [], []>} : vector<8x4xf32>, vector<4x128xf32>, vector<8x128xf32> -> vector<8x128xf32>
    %c0_3 = arith.constant 0 : index
    %c0_4 = arith.constant 0 : index
    %3 = vector.load %arg3[%c0_3, %c0_4] : memref<8x128xf32, #tpu.memory_space<vmem>>, vector<8x128xf32>
    tpu.vector_store %arg3[%c0_3, %c0_4], %2 {strides = array<i32>} : memref<8x128xf32, #tpu.memory_space<vmem>>, vector<8x128xf32>,
    %cst_5 = arith.constant dense<0.000000e+00> : vector<8xf32>
    %4 = vector.multi_reduction <add>, %2, %cst_5 [1] : vector<8x128xf32> to vector<8xf32>
    %5 = vector.shape_cast %4 : vector<8xf32> to vector<8x1xf32>
    %c0_6 = arith.constant 0 : index
    %c0_7 = arith.constant 0 : index
    %c0_8 = arith.constant 0 : index
    %6 = vector.load %arg4[%c0_6, %c0_7, %c0_8] : memref<1x8x1xf32, #tpu.memory_space<vmem>>, vector<1x8x1xf32>
    %7 = vector.shape_cast %6 : vector<1x8x1xf32> to vector<8x1xf32>
    %8 = vector.shape_cast %5 : vector<8x1xf32> to vector<1x8x1xf32>
    tpu.vector_store %arg4[%c0_6, %c0_7, %c0_8], %8 {strides = array<i32>} : memref<1x8x1xf32, #tpu.memory_space<vmem>>, vector<1x8x1xf32>,
    %9 = arith.mulf %2, %2 : vector<8x128xf32>
    %cst_9 = arith.constant dense<0.000000e+00> : vector<8xf32>
    %10 = vector.multi_reduction <add>, %9, %cst_9 [1] : vector<8x128xf32> to vector<8xf32>
    %11 = vector.shape_cast %10 : vector<8xf32> to vector<8x1xf32>
    %c0_10 = arith.constant 0 : index
    %c0_11 = arith.constant 0 : index
    %c0_12 = arith.constant 0 : index
    %12 = vector.load %arg5[%c0_10, %c0_11, %c0_12] : memref<1x8x1xf32, #tpu.memory_space<vmem>>, vector<1x8x1xf32>
    %13 = vector.shape_cast %12 : vector<1x8x1xf32> to vector<8x1xf32>
    %14 = vector.shape_cast %11 : vector<8x1xf32> to vector<1x8x1xf32>
    tpu.vector_store %arg5[%c0_10, %c0_11, %c0_12], %14 {strides = array<i32>} : memref<1x8x1xf32, #tpu.memory_space<vmem>>, vector<1x8x1xf32>,
    return
  }
  func.func @transform_0(%arg0: i32) -> (i32, i32) {
    %c0_i32 = arith.constant 0 : i32
    %c0_i32_0 = arith.constant 0 : i32
    return %c0_i32, %arg0 : i32, i32
  }
  func.func @transform_1(%arg0: i32) -> (i32, i32) {
    %c0_i32 = arith.constant 0 : i32
    %c0_i32_0 = arith.constant 0 : i32
    %c0_i32_1 = arith.constant 0 : i32
    return %c0_i32, %c0_i32_0 : i32, i32
  }
  func.func @transform_2(%arg0: i32) -> (i32, i32) {
    %c0_i32 = arith.constant 0 : i32
    %c0_i32_0 = arith.constant 0 : i32
    return %c0_i32, %arg0 : i32, i32
  }
  func.func @transform_3(%arg0: i32) -> (i32, i32, i32) {
    %c0_i32 = arith.constant 0 : i32
    %c0_i32_0 = arith.constant 0 : i32
    %c0_i32_1 = arith.constant 0 : i32
    return %arg0, %c0_i32, %c0_i32_0 : i32, i32, i32
  }
  func.func @transform_4(%arg0: i32) -> (i32, i32, i32) {
    %c0_i32 = arith.constant 0 : i32
    %c0_i32_0 = arith.constant 0 : i32
    %c0_i32_1 = arith.constant 0 : i32
    return %arg0, %c0_i32, %c0_i32_0 : i32, i32, i32
  }
}

module attributes {stable_mosaic.version = 11 : i64} {
  func.func @_bn_add_relu_kernel(%arg0: i32, %arg1: memref<8x128xf32, #tpu.memory_space<vmem>>, %arg2: memref<8x128xf32, #tpu.memory_space<vmem>>, %arg3: memref<8x1xf32, #tpu.memory_space<vmem>>, %arg4: memref<8x1xf32, #tpu.memory_space<vmem>>, %arg5: memref<8x1xf32, #tpu.memory_space<vmem>>, %arg6: memref<8x128xf32, #tpu.memory_space<vmem>>) attributes {dimension_semantics = [#tpu.dimension_semantics<parallel>], iteration_bounds = array<i64: 1>, scalar_prefetch = 0 : i64, scratch_operands = 0 : i64, tpu.core_type = #tpu.core_type<tc>, window_params = [{transform_indices = @transform_0, window_bounds = array<i64: 8, 128>}, {transform_indices = @transform_1, window_bounds = array<i64: 8, 128>}, {pipeline_mode = #tpu.pipeline_mode<synchronous>, transform_indices = @transform_2, window_bounds = array<i64: 8, 1>}, {pipeline_mode = #tpu.pipeline_mode<synchronous>, transform_indices = @transform_3, window_bounds = array<i64: 8, 1>}, {pipeline_mode = #tpu.pipeline_mode<synchronous>, transform_indices = @transform_4, window_bounds = array<i64: 8, 1>}, {transform_indices = @transform_5, window_bounds = array<i64: 8, 128>}]} {
    %c0 = arith.constant 0 : index
    %c0_0 = arith.constant 0 : index
    %0 = vector.load %arg1[%c0, %c0_0] : memref<8x128xf32, #tpu.memory_space<vmem>>, vector<8x128xf32>
    %c0_1 = arith.constant 0 : index
    %c0_2 = arith.constant 0 : index
    %1 = vector.load %arg3[%c0_1, %c0_2] : memref<8x1xf32, #tpu.memory_space<vmem>>, vector<8x1xf32>
    %2 = vector.broadcast %1 : vector<8x1xf32> to vector<8x128xf32>
    %3 = arith.mulf %0, %2 : vector<8x128xf32>
    %c0_3 = arith.constant 0 : index
    %c0_4 = arith.constant 0 : index
    %4 = vector.load %arg2[%c0_3, %c0_4] : memref<8x128xf32, #tpu.memory_space<vmem>>, vector<8x128xf32>
    %c0_5 = arith.constant 0 : index
    %c0_6 = arith.constant 0 : index
    %5 = vector.load %arg4[%c0_5, %c0_6] : memref<8x1xf32, #tpu.memory_space<vmem>>, vector<8x1xf32>
    %6 = vector.broadcast %5 : vector<8x1xf32> to vector<8x128xf32>
    %7 = arith.mulf %4, %6 : vector<8x128xf32>
    %8 = arith.addf %3, %7 : vector<8x128xf32>
    %c0_7 = arith.constant 0 : index
    %c0_8 = arith.constant 0 : index
    %9 = vector.load %arg5[%c0_7, %c0_8] : memref<8x1xf32, #tpu.memory_space<vmem>>, vector<8x1xf32>
    %10 = vector.broadcast %9 : vector<8x1xf32> to vector<8x128xf32>
    %11 = arith.addf %8, %10 : vector<8x128xf32>
    %cst = arith.constant 0.000000e+00 : f32
    %12 = vector.broadcast %cst : f32 to vector<8x128xf32>
    %13 = arith.maximumf %11, %12 : vector<8x128xf32>
    %c0_9 = arith.constant 0 : index
    %c0_10 = arith.constant 0 : index
    %14 = vector.load %arg6[%c0_9, %c0_10] : memref<8x128xf32, #tpu.memory_space<vmem>>, vector<8x128xf32>
    tpu.vector_store %arg6[%c0_9, %c0_10], %13 {strides = array<i32>} : memref<8x128xf32, #tpu.memory_space<vmem>>, vector<8x128xf32>,
    return
  }
  func.func @transform_0(%arg0: i32) -> (i32, i32) {
    %c0_i32 = arith.constant 0 : i32
    %c0_i32_0 = arith.constant 0 : i32
    return %c0_i32, %arg0 : i32, i32
  }
  func.func @transform_1(%arg0: i32) -> (i32, i32) {
    %c0_i32 = arith.constant 0 : i32
    %c0_i32_0 = arith.constant 0 : i32
    return %c0_i32, %arg0 : i32, i32
  }
  func.func @transform_2(%arg0: i32) -> (i32, i32) {
    %c0_i32 = arith.constant 0 : i32
    %c0_i32_0 = arith.constant 0 : i32
    %c0_i32_1 = arith.constant 0 : i32
    return %c0_i32, %c0_i32_0 : i32, i32
  }
  func.func @transform_3(%arg0: i32) -> (i32, i32) {
    %c0_i32 = arith.constant 0 : i32
    %c0_i32_0 = arith.constant 0 : i32
    %c0_i32_1 = arith.constant 0 : i32
    return %c0_i32, %c0_i32_0 : i32, i32
  }
  func.func @transform_4(%arg0: i32) -> (i32, i32) {
    %c0_i32 = arith.constant 0 : i32
    %c0_i32_0 = arith.constant 0 : i32
    %c0_i32_1 = arith.constant 0 : i32
    return %c0_i32, %c0_i32_0 : i32, i32
  }
  func.func @transform_5(%arg0: i32) -> (i32, i32) {
    %c0_i32 = arith.constant 0 : i32
    %c0_i32_0 = arith.constant 0 : i32
    return %c0_i32, %arg0 : i32, i32
  }
}

</mosaic_0001>

<llo_original>
// kernel: residual_block.4
$region0: #{residual_block.4}
  #allocation0 [shape = 'u32[]', space=smem, size = 0x4, offset = 0x4, fixed_abs, tag = 'smem constant byte address 0x4 - core index']
  #allocation1 [shape = 'u32[144,128]{1,0:T(1,128)}', space=vmem, size = 0x12000, scoped, tag = 'internal scratch']
  %s0 = inlined_call_operand.vmem [shape: f32[36,128], index: 0, kind: input, shape index: {}]
  %s1 = inlined_call_operand.vmem [shape: f32[8,36], index: 1, kind: input, shape index: {}]
  %s2 = inlined_call_operand.vmem [shape: f32[8,128], index: 2, kind: output, shape index: {0}]
  %s3 = inlined_call_operand.vmem [shape: f32[1,8,1], index: 3, kind: output, shape index: {1}]
  %s4 = inlined_call_operand.vmem [shape: f32[1,8,1], index: 4, kind: output, shape index: {2}]
  %5 = xla_tuple %s2, %s3, %s4
  %s6 = sld [smem:[#allocation0]]
  $region34: #{residual_block.4} parent=0
    _
  %s8 = ssub.s32 1, %s6
  %s9 = scalar_select 0, %s8, %s6
  // Predicated region
  $region2: #{residual_block.4} parent=0 // pred_check
    _
  $region3: #{residual_block.4} parent=0 // pred_check_branch
    %11 = sbr.rel (0) target = $region5
  $region4: #{residual_block.4} parent=0 // pred_region
    _
  $region5: #{residual_block.4} parent=0 // pred_fallthru
    _
  // Predicated region
  $region6: #{residual_block.4} parent=0 // pred_check
    _
  $region7: #{residual_block.4} parent=0 // pred_check_branch
    %13 = sbr.rel (0) target = $region9
  $region8: #{residual_block.4} parent=0 // pred_region
    _
  $region9: #{residual_block.4} parent=0 // pred_fallthru
    _
  %v14 = vld [vmem:[%s1] sm:$0xff]
  %v15 = vld [vmem:[%s0] sm:$0xff]
  %v16 = vld [vmem:[%s0 + $0x8] sm:$0xff]
  %v17 = vld [vmem:[%s0 + $0x10] sm:$0xff]
  %v18 = vld [vmem:[%s0 + $0x18] sm:$0xff]
  %v19 = vld [vmem:[%s0 + $0x20] sm:$0xf]
  %vm20 = vcmask 293888
  %v22 = vsel %vm20, %v14, 0
  %vm24 = vcmask 1043456
  %v26 = vsel %vm24, %v19, 0
  %28 = vmatprep.subr.mxu0 0.0
  %29 = vmatpush1.msra.mxu0 %v15
  %30 = vmatprep.subr.mxu0 0.0
  %31 = vmatpush1.msra.mxu0 %v16
  %32 = vmatprep.subr.mxu0 0.0
  %33 = vmatpush1.msra.mxu0 %v17
  %34 = vmatprep.subr.mxu0 0.0
  %35 = vmatpush1.msra.mxu0 %v18
  %36 = vmatprep.subr.mxu0 0.0
  %37 = vmatpush1.msra.mxu0 %v26
  %38 = vmatprep.subr.mxu0 0.0
  %39 = vmatpush1.msra.mxu0 0.0
  %40 = vmatprep.subr.mxu0 0.0
  %41 = vmatpush1.msra.mxu0 0.0
  %42 = vmatprep.subr.mxu0 0.0
  %43 = vmatpush1.msra.mxu0 0.0
  %44 = vmatprep.subr.mxu0 0.0
  %45 = vmatpush1.msra.mxu0 0.0
  %46 = vmatprep.subr.mxu0 0.0
  %47 = vmatpush1.msra.mxu0 0.0
  %48 = vmatprep.subr.mxu0 0.0
  %49 = vmatpush1.msra.mxu0 0.0
  %50 = vmatprep.subr.mxu0 0.0
  %51 = vmatpush1.msra.mxu0 0.0
  %52 = vmatprep.subr.mxu0 0.0
  %53 = vmatpush1.msra.mxu0 0.0
  %54 = vmatprep.subr.mxu0 0.0
  %55 = vmatpush1.msra.mxu0 0.0
  %56 = vmatprep.subr.mxu0 0.0
  %57 = vmatpush1.msra.mxu0 0.0
  %58 = vmatprep.subr.mxu0 0.0
  %59 = vmatpush1.msra.mxu0 0.0
  %60 = vmatprep.subr.mxu0 0.0
  %61 = vmatpush1.msra.mxu0 0.0
  %62 = vmatprep.subr.mxu0 0.0
  %63 = vmatpush1.msra.mxu0 0.0
  %64 = vmatprep.subr.mxu0 0.0
  %65 = vmatpush1.msra.mxu0 0.0
  %66 = vmatprep.subr.mxu0 0.0
  %67 = vmatpush1.msra.mxu0 0.0
  %68 = vmatprep.subr.mxu0 0.0
  %69 = vmatpush1.msra.mxu0 0.0
  %70 = vmatprep.subr.mxu0 0.0
  %71 = vmatpush1.msra.mxu0 0.0
  %72 = vmatprep.subr.mxu0 0.0
  %73 = vmatpush1.msra.mxu0 0.0
  %74 = vmatprep.subr.mxu0 0.0
  %75 = vmatpush1.msra.mxu0 0.0
  %76 = vmatprep.subr.mxu0 0.0
  %77 = vmatpush1.msra.mxu0 0.0
  %78 = vmatprep.subr.mxu0 0.0
  %79 = vmatpush1.msra.mxu0 0.0
  %80 = vmatprep.subr.mxu0 0.0
  %81 = vmatpush1.msra.mxu0 0.0
  %82 = vmatprep.subr.mxu0 0.0
  %83 = vmatpush1.msra.mxu0 0.0
  %84 = vmatprep.subr.mxu0 0.0
  %85 = vmatpush1.msra.mxu0 0.0
  %86 = vmatprep.subr.mxu0 0.0
  %87 = vmatpush1.msra.mxu0 0.0
  %88 = vmatprep.subr.mxu0 0.0
  %89 = vmatpush1.msra.mxu0 0.0
  %90 = vmatprep.subr.mxu0 0.0
  %91 = vmatpush1.msra.mxu0 0.0
  %92 = vmatprep.mubr.f32.mxu0 0.0
  %93 = vmatmul.mubr.f32.gmra.mrb[0].mxu0 %v22
  %v94 = vpop.f32.mrb[0].mxu0
  %v95 = vadd.f32 0.0, %v94
  %v96 = vpop.f32.mrb[0].mxu0
  %97 = vdwg.mxu0
  %98 = vst [vmem:[%s2] sm:$0xff] %v95
  %99 = vadd.xlane.f32.xlu0 %v95
  %v100 = vpop.xlane.xlu0 %99
  %vm101 = vcmask 7168
  %102 = vst.msk [vmem:[%s3] sm:$0xff] %vm101, %v100
  %v103 = vmul.f32 %v95, %v95
  %104 = vadd.xlane.f32.xlu0 %v103
  %v105 = vpop.xlane.xlu0 %104
  %106 = vst.msk [vmem:[%s4] sm:$0xff] %vm101, %v105
  // Predicated region
  $region10: #{residual_block.4} parent=0 // pred_check
    _
  $region11: #{residual_block.4} parent=0 // pred_check_branch
    %108 = sbr.rel (0) target = $region13
  $region12: #{residual_block.4} parent=0 // pred_region
    _
  $region13: #{residual_block.4} parent=0 // pred_fallthru
    _
  // Predicated region
  $region14: #{residual_block.4} parent=0 // pred_check
    _
  $region15: #{residual_block.4} parent=0 // pred_check_branch
    %110 = sbr.rel (0) target = $region17
  $region16: #{residual_block.4} parent=0 // pred_region
    _
  $region17: #{residual_block.4} parent=0 // pred_fallthru
    _
  // Predicated region
  $region18: #{residual_block.4} parent=0 // pred_check
    _
  $region19: #{residual_block.4} parent=0 // pred_check_branch
    %112 = sbr.rel (0) target = $region21
  $region20: #{residual_block.4} parent=0 // pred_region
    _
  $region21: #{residual_block.4} parent=0 // pred_fallthru
    _
  // Predicated region
  $region22: #{residual_block.4} parent=0 // pred_check
    _
  $region23: #{residual_block.4} parent=0 // pred_check_branch
    %114 = sbr.rel (0) target = $region25
  $region24: #{residual_block.4} parent=0 // pred_region
    _
  $region25: #{residual_block.4} parent=0 // pred_fallthru
    _
  // Predicated region
  $region26: #{residual_block.4} parent=0 // pred_check
    _
  $region27: #{residual_block.4} parent=0 // pred_check_branch
    %116 = sbr.rel (0) target = $region29
  $region28: #{residual_block.4} parent=0 // pred_region
    _
  $region29: #{residual_block.4} parent=0 // pred_fallthru
    _
  // Predicated region
  $region30: #{residual_block.4} parent=0 // pred_check
    _
  $region31: #{residual_block.4} parent=0 // pred_check_branch
    %118 = sbr.rel (0) target = $region33
  $region32: #{residual_block.4} parent=0 // pred_region
    _
  $region33: #{residual_block.4} parent=0 // pred_fallthru
    _

// kernel: residual_block.5
$region0: #{residual_block.5}
  #allocation0 [shape = 'u32[]', space=smem, size = 0x4, offset = 0x4, fixed_abs, tag = 'smem constant byte address 0x4 - core index']
  #allocation1 [shape = 'u32[144,128]{1,0:T(1,128)}', space=vmem, size = 0x12000, scoped, tag = 'internal scratch']
  %s0 = inlined_call_operand.vmem [shape: f32[72,128], index: 0, kind: input, shape index: {}]
  %s1 = inlined_call_operand.vmem [shape: f32[8,72], index: 1, kind: input, shape index: {}]
  %s2 = inlined_call_operand.vmem [shape: f32[8,128], index: 2, kind: output, shape index: {0}]
  %s3 = inlined_call_operand.vmem [shape: f32[1,8,1], index: 3, kind: output, shape index: {1}]
  %s4 = inlined_call_operand.vmem [shape: f32[1,8,1], index: 4, kind: output, shape index: {2}]
  %5 = xla_tuple %s2, %s3, %s4
  %s6 = sld [smem:[#allocation0]]
  $region34: #{residual_block.5} parent=0
    _
  %s8 = ssub.s32 1, %s6
  %s9 = scalar_select 0, %s8, %s6
  // Predicated region
  $region2: #{residual_block.5} parent=0 // pred_check
    _
  $region3: #{residual_block.5} parent=0 // pred_check_branch
    %11 = sbr.rel (0) target = $region5
  $region4: #{residual_block.5} parent=0 // pred_region
    _
  $region5: #{residual_block.5} parent=0 // pred_fallthru
    _
  // Predicated region
  $region6: #{residual_block.5} parent=0 // pred_check
    _
  $region7: #{residual_block.5} parent=0 // pred_check_branch
    %13 = sbr.rel (0) target = $region9
  $region8: #{residual_block.5} parent=0 // pred_region
    _
  $region9: #{residual_block.5} parent=0 // pred_fallthru
    _
  %v14 = vld [vmem:[%s1] sm:$0xff]
  %v15 = vld [vmem:[%s0] sm:$0xff]
  %v16 = vld [vmem:[%s0 + $0x8] sm:$0xff]
  %v17 = vld [vmem:[%s0 + $0x10] sm:$0xff]
  %v18 = vld [vmem:[%s0 + $0x18] sm:$0xff]
  %v19 = vld [vmem:[%s0 + $0x20] sm:$0xff]
  %v20 = vld [vmem:[%s0 + $0x28] sm:$0xff]
  %v21 = vld [vmem:[%s0 + $0x30] sm:$0xff]
  %v22 = vld [vmem:[%s0 + $0x38] sm:$0xff]
  %v23 = vld [vmem:[%s0 + $0x40] sm:$0xff]
  %vm24 = vcmask 588800
  %v26 = vsel %vm24, %v14, 0
  %28 = vmatprep.subr.mxu0 0.0
  %29 = vmatpush1.msra.mxu0 %v15
  %30 = vmatprep.subr.mxu0 0.0
  %31 = vmatpush1.msra.mxu0 %v16
  %32 = vmatprep.subr.mxu0 0.0
  %33 = vmatpush1.msra.mxu0 %v17
  %34 = vmatprep.subr.mxu0 0.0
  %35 = vmatpush1.msra.mxu0 %v18
  %36 = vmatprep.subr.mxu0 0.0
  %37 = vmatpush1.msra.mxu0 %v19
  %38 = vmatprep.subr.mxu0 0.0
  %39 = vmatpush1.msra.mxu0 %v20
  %40 = vmatprep.subr.mxu0 0.0
  %41 = vmatpush1.msra.mxu0 %v21
  %42 = vmatprep.subr.mxu0 0.0
  %43 = vmatpush1.msra.mxu0 %v22
  %44 = vmatprep.subr.mxu0 0.0
  %45 = vmatpush1.msra.mxu0 %v23
  %46 = vmatprep.subr.mxu0 0.0
  %47 = vmatpush1.msra.mxu0 0.0
  %48 = vmatprep.subr.mxu0 0.0
  %49 = vmatpush1.msra.mxu0 0.0
  %50 = vmatprep.subr.mxu0 0.0
  %51 = vmatpush1.msra.mxu0 0.0
  %52 = vmatprep.subr.mxu0 0.0
  %53 = vmatpush1.msra.mxu0 0.0
  %54 = vmatprep.subr.mxu0 0.0
  %55 = vmatpush1.msra.mxu0 0.0
  %56 = vmatprep.subr.mxu0 0.0
  %57 = vmatpush1.msra.mxu0 0.0
  %58 = vmatprep.subr.mxu0 0.0
  %59 = vmatpush1.msra.mxu0 0.0
  %60 = vmatprep.subr.mxu0 0.0
  %61 = vmatpush1.msra.mxu0 0.0
  %62 = vmatprep.subr.mxu0 0.0
  %63 = vmatpush1.msra.mxu0 0.0
  %64 = vmatprep.subr.mxu0 0.0
  %65 = vmatpush1.msra.mxu0 0.0
  %66 = vmatprep.subr.mxu0 0.0
  %67 = vmatpush1.msra.mxu0 0.0
  %68 = vmatprep.subr.mxu0 0.0
  %69 = vmatpush1.msra.mxu0 0.0
  %70 = vmatprep.subr.mxu0 0.0
  %71 = vmatpush1.msra.mxu0 0.0
  %72 = vmatprep.subr.mxu0 0.0
  %73 = vmatpush1.msra.mxu0 0.0
  %74 = vmatprep.subr.mxu0 0.0
  %75 = vmatpush1.msra.mxu0 0.0
  %76 = vmatprep.subr.mxu0 0.0
  %77 = vmatpush1.msra.mxu0 0.0
  %78 = vmatprep.subr.mxu0 0.0
  %79 = vmatpush1.msra.mxu0 0.0
  %80 = vmatprep.subr.mxu0 0.0
  %81 = vmatpush1.msra.mxu0 0.0
  %82 = vmatprep.subr.mxu0 0.0
  %83 = vmatpush1.msra.mxu0 0.0
  %84 = vmatprep.subr.mxu0 0.0
  %85 = vmatpush1.msra.mxu0 0.0
  %86 = vmatprep.subr.mxu0 0.0
  %87 = vmatpush1.msra.mxu0 0.0
  %88 = vmatprep.subr.mxu0 0.0
  %89 = vmatpush1.msra.mxu0 0.0
  %90 = vmatprep.subr.mxu0 0.0
  %91 = vmatpush1.msra.mxu0 0.0
  %92 = vmatprep.mubr.f32.mxu0 0.0
  %93 = vmatmul.mubr.f32.gmra.mrb[0].mxu0 %v26
  %v94 = vpop.f32.mrb[0].mxu0
  %v95 = vadd.f32 0.0, %v94
  %v96 = vpop.f32.mrb[0].mxu0
  %97 = vdwg.mxu0
  %98 = vst [vmem:[%s2] sm:$0xff] %v95
  %99 = vadd.xlane.f32.xlu0 %v95
  %v100 = vpop.xlane.xlu0 %99
  %vm101 = vcmask 7168
  %102 = vst.msk [vmem:[%s3] sm:$0xff] %vm101, %v100
  %v103 = vmul.f32 %v95, %v95
  %104 = vadd.xlane.f32.xlu0 %v103
  %v105 = vpop.xlane.xlu0 %104
  %106 = vst.msk [vmem:[%s4] sm:$0xff] %vm101, %v105
  // Predicated region
  $region10: #{residual_block.5} parent=0 // pred_check
    _
  $region11: #{residual_block.5} parent=0 // pred_check_branch
    %108 = sbr.rel (0) target = $region13
  $region12: #{residual_block.5} parent=0 // pred_region
    _
  $region13: #{residual_block.5} parent=0 // pred_fallthru
    _
  // Predicated region
  $region14: #{residual_block.5} parent=0 // pred_check
    _
  $region15: #{residual_block.5} parent=0 // pred_check_branch
    %110 = sbr.rel (0) target = $region17
  $region16: #{residual_block.5} parent=0 // pred_region
    _
  $region17: #{residual_block.5} parent=0 // pred_fallthru
    _
  // Predicated region
  $region18: #{residual_block.5} parent=0 // pred_check
    _
  $region19: #{residual_block.5} parent=0 // pred_check_branch
    %112 = sbr.rel (0) target = $region21
  $region20: #{residual_block.5} parent=0 // pred_region
    _
  $region21: #{residual_block.5} parent=0 // pred_fallthru
    _
  // Predicated region
  $region22: #{residual_block.5} parent=0 // pred_check
    _
  $region23: #{residual_block.5} parent=0 // pred_check_branch
    %114 = sbr.rel (0) target = $region25
  $region24: #{residual_block.5} parent=0 // pred_region
    _
  $region25: #{residual_block.5} parent=0 // pred_fallthru
    _
  // Predicated region
  $region26: #{residual_block.5} parent=0 // pred_check
    _
  $region27: #{residual_block.5} parent=0 // pred_check_branch
    %116 = sbr.rel (0) target = $region29
  $region28: #{residual_block.5} parent=0 // pred_region
    _
  $region29: #{residual_block.5} parent=0 // pred_fallthru
    _
  // Predicated region
  $region30: #{residual_block.5} parent=0 // pred_check
    _
  $region31: #{residual_block.5} parent=0 // pred_check_branch
    %118 = sbr.rel (0) target = $region33
  $region32: #{residual_block.5} parent=0 // pred_region
    _
  $region33: #{residual_block.5} parent=0 // pred_fallthru
    _

// kernel: residual_block.6
$region0: #{residual_block.6}
  #allocation0 [shape = 'u32[]', space=smem, size = 0x4, offset = 0x4, fixed_abs, tag = 'smem constant byte address 0x4 - core index']
  #allocation1 [shape = 'u32[144,128]{1,0:T(1,128)}', space=vmem, size = 0x12000, scoped, tag = 'internal scratch']
  %s0 = inlined_call_operand.vmem [shape: f32[4,128], index: 0, kind: input, shape index: {}]
  %s1 = inlined_call_operand.vmem [shape: f32[8,4], index: 1, kind: input, shape index: {}]
  %s2 = inlined_call_operand.vmem [shape: f32[8,128], index: 2, kind: output, shape index: {0}]
  %s3 = inlined_call_operand.vmem [shape: f32[1,8,1], index: 3, kind: output, shape index: {1}]
  %s4 = inlined_call_operand.vmem [shape: f32[1,8,1], index: 4, kind: output, shape index: {2}]
  %5 = xla_tuple %s2, %s3, %s4
  %s6 = sld [smem:[#allocation0]]
  $region34: #{residual_block.6} parent=0
    _
  %s8 = ssub.s32 1, %s6
  %s9 = scalar_select 0, %s8, %s6
  // Predicated region
  $region2: #{residual_block.6} parent=0 // pred_check
    _
  $region3: #{residual_block.6} parent=0 // pred_check_branch
    %11 = sbr.rel (0) target = $region5
  $region4: #{residual_block.6} parent=0 // pred_region
    _
  $region5: #{residual_block.6} parent=0 // pred_fallthru
    _
  // Predicated region
  $region6: #{residual_block.6} parent=0 // pred_check
    _
  $region7: #{residual_block.6} parent=0 // pred_check_branch
    %13 = sbr.rel (0) target = $region9
  $region8: #{residual_block.6} parent=0 // pred_region
    _
  $region9: #{residual_block.6} parent=0 // pred_fallthru
    _
  %v14 = vld [vmem:[%s1] sm:$0xff]
  %v15 = vld [vmem:[%s0] sm:$0xf]
  %vm16 = vcmask 31744
  %v18 = vsel %vm16, %v14, 0
  %vm20 = vcmask 1043456
  %v22 = vsel %vm20, %v15, 0
  %24 = vmatprep.subr.mxu0 0.0
  %25 = vmatpush1.msra.mxu0 %v22
  %26 = vmatprep.subr.mxu0 0.0
  %27 = vmatpush1.msra.mxu0 0.0
  %28 = vmatprep.subr.mxu0 0.0
  %29 = vmatpush1.msra.mxu0 0.0
  %30 = vmatprep.subr.mxu0 0.0
  %31 = vmatpush1.msra.mxu0 0.0
  %32 = vmatprep.subr.mxu0 0.0
  %33 = vmatpush1.msra.mxu0 0.0
  %34 = vmatprep.subr.mxu0 0.0
  %35 = vmatpush1.msra.mxu0 0.0
  %36 = vmatprep.subr.mxu0 0.0
  %37 = vmatpush1.msra.mxu0 0.0
  %38 = vmatprep.subr.mxu0 0.0
  %39 = vmatpush1.msra.mxu0 0.0
  %40 = vmatprep.subr.mxu0 0.0
  %41 = vmatpush1.msra.mxu0 0.0
  %42 = vmatprep.subr.mxu0 0.0
  %43 = vmatpush1.msra.mxu0 0.0
  %44 = vmatprep.subr.mxu0 0.0
  %45 = vmatpush1.msra.mxu0 0.0
  %46 = vmatprep.subr.mxu0 0.0
  %47 = vmatpush1.msra.mxu0 0.0
  %48 = vmatprep.subr.mxu0 0.0
  %49 = vmatpush1.msra.mxu0 0.0
  %50 = vmatprep.subr.mxu0 0.0
  %51 = vmatpush1.msra.mxu0 0.0
  %52 = vmatprep.subr.mxu0 0.0
  %53 = vmatpush1.msra.mxu0 0.0
  %54 = vmatprep.subr.mxu0 0.0
  %55 = vmatpush1.msra.mxu0 0.0
  %56 = vmatprep.subr.mxu0 0.0
  %57 = vmatpush1.msra.mxu0 0.0
  %58 = vmatprep.subr.mxu0 0.0
  %59 = vmatpush1.msra.mxu0 0.0
  %60 = vmatprep.subr.mxu0 0.0
  %61 = vmatpush1.msra.mxu0 0.0
  %62 = vmatprep.subr.mxu0 0.0
  %63 = vmatpush1.msra.mxu0 0.0
  %64 = vmatprep.subr.mxu0 0.0
  %65 = vmatpush1.msra.mxu0 0.0
  %66 = vmatprep.subr.mxu0 0.0
  %67 = vmatpush1.msra.mxu0 0.0
  %68 = vmatprep.subr.mxu0 0.0
  %69 = vmatpush1.msra.mxu0 0.0
  %70 = vmatprep.subr.mxu0 0.0
  %71 = vmatpush1.msra.mxu0 0.0
  %72 = vmatprep.subr.mxu0 0.0
  %73 = vmatpush1.msra.mxu0 0.0
  %74 = vmatprep.subr.mxu0 0.0
  %75 = vmatpush1.msra.mxu0 0.0
  %76 = vmatprep.subr.mxu0 0.0
  %77 = vmatpush1.msra.mxu0 0.0
  %78 = vmatprep.subr.mxu0 0.0
  %79 = vmatpush1.msra.mxu0 0.0
  %80 = vmatprep.subr.mxu0 0.0
  %81 = vmatpush1.msra.mxu0 0.0
  %82 = vmatprep.subr.mxu0 0.0
  %83 = vmatpush1.msra.mxu0 0.0
  %84 = vmatprep.subr.mxu0 0.0
  %85 = vmatpush1.msra.mxu0 0.0
  %86 = vmatprep.subr.mxu0 0.0
  %87 = vmatpush1.msra.mxu0 0.0
  %88 = vmatprep.mubr.f32.mxu0 0.0
  %89 = vmatmul.mubr.f32.gmra.mrb[0].mxu0 %v18
  %v90 = vpop.f32.mrb[0].mxu0
  %v91 = vadd.f32 0.0, %v90
  %v92 = vpop.f32.mrb[0].mxu0
  %93 = vdwg.mxu0
  %94 = vst [vmem:[%s2] sm:$0xff] %v91
  %95 = vadd.xlane.f32.xlu0 %v91
  %v96 = vpop.xlane.xlu0 %95
  %vm97 = vcmask 7168
  %98 = vst.msk [vmem:[%s3] sm:$0xff] %vm97, %v96
  %v99 = vmul.f32 %v91, %v91
  %100 = vadd.xlane.f32.xlu0 %v99
  %v101 = vpop.xlane.xlu0 %100
  %102 = vst.msk [vmem:[%s4] sm:$0xff] %vm97, %v101
  // Predicated region
  $region10: #{residual_block.6} parent=0 // pred_check
    _
  $region11: #{residual_block.6} parent=0 // pred_check_branch
    %104 = sbr.rel (0) target = $region13
  $region12: #{residual_block.6} parent=0 // pred_region
    _
  $region13: #{residual_block.6} parent=0 // pred_fallthru
    _
  // Predicated region
  $region14: #{residual_block.6} parent=0 // pred_check
    _
  $region15: #{residual_block.6} parent=0 // pred_check_branch
    %106 = sbr.rel (0) target = $region17
  $region16: #{residual_block.6} parent=0 // pred_region
    _
  $region17: #{residual_block.6} parent=0 // pred_fallthru
    _
  // Predicated region
  $region18: #{residual_block.6} parent=0 // pred_check
    _
  $region19: #{residual_block.6} parent=0 // pred_check_branch
    %108 = sbr.rel (0) target = $region21
  $region20: #{residual_block.6} parent=0 // pred_region
    _
  $region21: #{residual_block.6} parent=0 // pred_fallthru
    _
  // Predicated region
  $region22: #{residual_block.6} parent=0 // pred_check
    _
  $region23: #{residual_block.6} parent=0 // pred_check_branch
    %110 = sbr.rel (0) target = $region25
  $region24: #{residual_block.6} parent=0 // pred_region
    _
  $region25: #{residual_block.6} parent=0 // pred_fallthru
    _
  // Predicated region
  $region26: #{residual_block.6} parent=0 // pred_check
    _
  $region27: #{residual_block.6} parent=0 // pred_check_branch
    %112 = sbr.rel (0) target = $region29
  $region28: #{residual_block.6} parent=0 // pred_region
    _
  $region29: #{residual_block.6} parent=0 // pred_fallthru
    _
  // Predicated region
  $region30: #{residual_block.6} parent=0 // pred_check
    _
  $region31: #{residual_block.6} parent=0 // pred_check_branch
    %114 = sbr.rel (0) target = $region33
  $region32: #{residual_block.6} parent=0 // pred_region
    _
  $region33: #{residual_block.6} parent=0 // pred_fallthru
    _

// kernel: residual_block.7
$region0: #{residual_block.7}
  #allocation0 [shape = 'u32[]', space=smem, size = 0x4, offset = 0x4, fixed_abs, tag = 'smem constant byte address 0x4 - core index']
  #allocation1 [shape = 'u32[144,128]{1,0:T(1,128)}', space=vmem, size = 0x12000, scoped, tag = 'internal scratch']
  %s0 = inlined_call_operand.vmem [shape: f32[8,128], index: 0, kind: input, shape index: {}]
  %s1 = inlined_call_operand.vmem [shape: f32[8,128], index: 1, kind: input, shape index: {}]
  %s2 = inlined_call_operand.vmem [shape: f32[8,1], index: 2, kind: input, shape index: {}]
  %s3 = inlined_call_operand.vmem [shape: f32[8,1], index: 3, kind: input, shape index: {}]
  %s4 = inlined_call_operand.vmem [shape: f32[8,1], index: 4, kind: input, shape index: {}]
  %s5 = inlined_call_operand.vmem [shape: f32[8,128], index: 5, kind: output, shape index: {}]
  %s6 = sld [smem:[#allocation0]]
  $region30: #{residual_block.7} parent=0
    _
  %s8 = ssub.s32 1, %s6
  %s9 = scalar_select 0, %s8, %s6
  // Predicated region
  $region2: #{residual_block.7} parent=0 // pred_check
    _
  $region3: #{residual_block.7} parent=0 // pred_check_branch
    %11 = sbr.rel (0) target = $region5
  $region4: #{residual_block.7} parent=0 // pred_region
    _
  $region5: #{residual_block.7} parent=0 // pred_fallthru
    _
  // Predicated region
  $region6: #{residual_block.7} parent=0 // pred_check
    _
  $region7: #{residual_block.7} parent=0 // pred_check_branch
    %13 = sbr.rel (0) target = $region9
  $region8: #{residual_block.7} parent=0 // pred_region
    _
  $region9: #{residual_block.7} parent=0 // pred_fallthru
    _
  // Predicated region
  $region10: #{residual_block.7} parent=0 // pred_check
    _
  $region11: #{residual_block.7} parent=0 // pred_check_branch
    %15 = sbr.rel (0) target = $region13
  $region12: #{residual_block.7} parent=0 // pred_region
    _
  $region13: #{residual_block.7} parent=0 // pred_fallthru
    _
  // Predicated region
  $region14: #{residual_block.7} parent=0 // pred_check
    _
  $region15: #{residual_block.7} parent=0 // pred_check_branch
    %17 = sbr.rel (0) target = $region17
  $region16: #{residual_block.7} parent=0 // pred_region
    _
  $region17: #{residual_block.7} parent=0 // pred_fallthru
    _
  // Predicated region
  $region18: #{residual_block.7} parent=0 // pred_check
    _
  $region19: #{residual_block.7} parent=0 // pred_check_branch
    %19 = sbr.rel (0) target = $region21
  $region20: #{residual_block.7} parent=0 // pred_region
    _
  $region21: #{residual_block.7} parent=0 // pred_fallthru
    _
  %v20 = vld [vmem:[%s0] sm:$0xff]
  %v21 = vld [vmem:[%s2] sm:$0xff]
  %23 = vset.pattern.permute.xlu0 0
  %24 = vperm.xlu0 %23, %v21
  %v25 = vpop.permute.xlu0 %24
  %v27 = vmul.f32 %v20, %v25
  %v28 = vld [vmem:[%s1] sm:$0xff]
  %v29 = vld [vmem:[%s3] sm:$0xff]
  %31 = vset.pattern.permute.xlu0 0
  %32 = vperm.xlu0 %31, %v29
  %v33 = vpop.permute.xlu0 %32
  %v35 = vmul.f32 %v28, %v33
  %v36 = vadd.f32 %v27, %v35
  %v37 = vld [vmem:[%s4] sm:$0xff]
  %39 = vset.pattern.permute.xlu0 0
  %40 = vperm.xlu0 %39, %v37
  %v41 = vpop.permute.xlu0 %40
  %v43 = vadd.f32 %v36, %v41
  %v44 = vmax.f32 %v43, 0.0
  %45 = vst [vmem:[%s5] sm:$0xff] %v44
  // Predicated region
  $region22: #{residual_block.7} parent=0 // pred_check
    _
  $region23: #{residual_block.7} parent=0 // pred_check_branch
    %47 = sbr.rel (0) target = $region25
  $region24: #{residual_block.7} parent=0 // pred_region
    _
  $region25: #{residual_block.7} parent=0 // pred_fallthru
    _
  // Predicated region
  $region26: #{residual_block.7} parent=0 // pred_check
    _
  $region27: #{residual_block.7} parent=0 // pred_check_branch
    %49 = sbr.rel (0) target = $region29
  $region28: #{residual_block.7} parent=0 // pred_region
    _
  $region29: #{residual_block.7} parent=0 // pred_fallthru
    _

</llo_original>
